<compile_context>
chip_gen: v5e
topology: v5e:2x2
jax: 0.10.0
libtpu: 0.0.40
codegen_flags: <defaults>
</compile_context>

<pallas_src>
import jax
import jax.numpy as jnp
from jax.experimental import pallas as pl
from jax.experimental.pallas import tpu as pltpu

# Grayscale mix and sobel coefficients, identical to the module's constants.
_GRAY_R, _GRAY_G, _GRAY_B = 0.299, 0.587, 0.114
SOBEL_X = ((-1.0, 0.0, 1.0), (-2.0, 0.0, 2.0), (-1.0, 0.0, 1.0))
SOBEL_Y = ((-1.0, -2.0, -1.0), (0.0, 0.0, 0.0), (1.0, 2.0, 1.0))


def _round_up(x, m):
    return (x + m - 1) // m * m


def _sketch_kernel(img_ref, out_ref, dext_ref, sext_ref):
    # img_ref : (3, H, W)   batch-0 image, resident in VMEM, storage dtype.
    # out_ref : (TR, W)     sketch rows for this tile, final dtype.
    # dext_ref: (EXT, W) f32  horizontal-diff rows   } zero-extended: 1 zero
    # sext_ref: (EXT, W) f32  horizontal-smooth rows } row on top, EXT-1-WIN
    #                                                  zero rows at the bottom.
    tr, w = out_ref.shape
    h = img_ref.shape[1]
    ext = dext_ref.shape[0]
    win = min(tr + 2, h)                      # image rows loaded per tile

    t = pl.program_id(0)
    row0 = pl.multiple_of(t * tr, 8)          # first output row of this tile
    # Clamped, always-in-bounds read window [ws, ws + win) of the image rows.
    ws = jnp.clip(row0 - 1, 0, h - win)

    # Grayscale mix; narrow storage dtype -> f32 cast happens here (free VPU
    # filler under the DMA), not in the wrapper.
    rows = pl.ds(ws, win)
    gray = (_GRAY_R * img_ref[0, rows, :].astype(jnp.float32)
            + _GRAY_G * img_ref[1, rows, :].astype(jnp.float32)
            + _GRAY_B * img_ref[2, rows, :].astype(jnp.float32))     # (win, w)

    # Separable sobel, horizontal pass.  Zero-column concatenate gives the
    # left/right neighbours with the conv's zero padding at columns 0 / w-1
    # (direction-unambiguous, unlike lane rolls).
    zcol = jnp.zeros((win, 1), jnp.float32)
    left = jnp.concatenate([zcol, gray[:, :w - 1]], axis=1)     # in[i, j-1]
    right = jnp.concatenate([gray[:, 1:], zcol], axis=1)        # in[i, j+1]
    dxc = right - left                        # horizontal [-1, 0, 1]
    sxc = left + 2.0 * gray + right           # horizontal [ 1, 2, 1]

    # Stage into the zero-extended buffers.  Buffer row 0 and rows >= 1+win
    # stay zero: they are the top / bottom-of-image halo rows (and absorb the
    # don't-care rows of a padded last tile).
    dext_ref[0:1, :] = jnp.zeros((1, w), jnp.float32)
    sext_ref[0:1, :] = jnp.zeros((1, w), jnp.float32)
    dext_ref[1 + win:, :] = jnp.zeros((ext - 1 - win, w), jnp.float32)
    sext_ref[1 + win:, :] = jnp.zeros((ext - 1 - win, w), jnp.float32)
    dext_ref[1:1 + win, :] = dxc
    sext_ref[1:1 + win, :] = sxc

    # Vertical 3-tap combine.  Output row j is absolute row r = row0 + j; its
    # (r-1, r, r+1) neighbours live at buffer rows (du+1+j, du+2+j, du+3+j).
    # Out-of-image neighbours land exactly on the zero halo rows.
    du = row0 - 1 - ws
    gx = (dext_ref[pl.ds(du + 1, tr), :]
          + 2.0 * dext_ref[pl.ds(du + 2, tr), :]
          + dext_ref[pl.ds(du + 3, tr), :])
    gy = sext_ref[pl.ds(du + 3, tr), :] - sext_ref[pl.ds(du + 1, tr), :]

    grad = jnp.sqrt(gx * gx + gy * gy)
    out_ref[...] = jax.nn.sigmoid(5.0 * (grad - 0.4)).astype(out_ref.dtype)


def differentiable_sketch(img, *, row_tile=None):
    """img: (N, 3, H, W) NCHW.  Returns sketch[0, 0] of shape (H, W), img.dtype."""
    N, C, H, W = img.shape
    if C != 3:
        raise NotImplementedError("kernel implements the RGB branch (img.shape[1] == 3)")

    if row_tile is None:
        # Mem-bound kernel: big tiles amortize the ~0.35 us/step grid overhead
        # (v6e hits ~85%+ of HBM roofline at >=512-row tiles).
        row_tile = 512
    row_tile = max(8, _round_up(min(row_tile, _round_up(H, 8)), 8))
    num_tiles = pl.cdiv(H, row_tile)
    hp = num_tiles * row_tile                         # padded output rows

    win = min(row_tile + 2, H)
    ext = win + (hp - H) + 2                          # 1 top zero + win + bottom zeros

    # VMEM budget: resident input block (x2 in case the pipeliner still
    # double-buffers the constant-index block), double-buffered output tile,
    # the two staging buffers, plus headroom for the live (win, W) temporaries.
    itemsize = jnp.dtype(img.dtype).itemsize
    vmem_bytes = (2 * 3 * H * W * itemsize
                  + 2 * row_tile * W * itemsize
                  + 2 * ext * W * 4
                  + 16 * max(win, row_tile) * W * 4)
    vmem_limit = int(min(max(vmem_bytes + (8 << 20), 32 << 20), 64 << 20))

    out = pl.pallas_call(
        _sketch_kernel,
        out_shape=jax.ShapeDtypeStruct((hp, W), img.dtype),
        grid=(num_tiles,),
        in_specs=[
            # Only batch element 0 contributes to the returned value: squeezed
            # batch dim + constant index map => the (3, H, W) image is DMA'd
            # from HBM exactly once, in its storage dtype, with no wrapper-side
            # slice / cast / pad pass.
            pl.BlockSpec((None, 3, H, W), lambda t: (0, 0, 0, 0)),
        ],
        out_specs=pl.BlockSpec((row_tile, W), lambda t: (t, 0)),
        scratch_shapes=[
            pltpu.VMEM((ext, W), jnp.float32),
            pltpu.VMEM((ext, W), jnp.float32),
        ],
        compiler_params=pltpu.CompilerParams(
            dimension_semantics=("parallel",),   # row tiles split across TCs
            vmem_limit_bytes=vmem_limit,
        ),
    )(img)

    # Columns are already exactly [0, W) and in the final dtype; only padded
    # rows (if H % row_tile != 0) need trimming.
    return out if hp == H else out[:H]


def _reference(img):
    """Pure-JAX reference mirroring the PyTorch forward (direct 3x3 convs)."""
    img = img.astype(jnp.float32)
    gray = 0.299 * img[:, 0] + 0.587 * img[:, 1] + 0.114 * img[:, 2]  # (N,H,W)
    N, H, W = gray.shape
    gpad = jnp.pad(gray, ((0, 0), (1, 1), (1, 1)))
    sx = jnp.asarray(SOBEL_X, jnp.float32)
    sy = jnp.asarray(SOBEL_Y, jnp.float32)
    gx = jnp.zeros_like(gray)
    gy = jnp.zeros_like(gray)
    for di in range(3):
        for dj in range(3):
            win = gpad[:, di:di + H, dj:dj + W]
            gx = gx + sx[di, dj] * win
            gy = gy + sy[di, dj] * win
    grad = jnp.sqrt(gx * gx + gy * gy)
    return jax.nn.sigmoid(5.0 * (grad - 0.4))[0]


if __name__ == "__main__":
    key = jax.random.PRNGKey(0)
    img = jax.random.uniform(key, (2, 3, 16, 16), dtype=jnp.float32)

    # row_tile=8 exercises the multi-tile (grid > 1) path, including the
    # top-of-image and bottom-of-image halo handling, at this small size.
    out = differentiable_sketch(img, row_tile=8)
    out = jax.block_until_ready(out)

    ref = _reference(img)
    assert out.shape == (16, 16), out.shape
    assert jnp.allclose(out, ref, atol=1e-5, rtol=1e-5), (
        float(jnp.max(jnp.abs(out - ref))))

    print("KERNEL_OK")
</pallas_src>

<mosaic_0001>
module attributes {stable_mosaic.version = 11 : i64} {
  func.func @_sketch_kernel(%arg0: i32, %arg1: memref<1x3x16x16xf32, #tpu.memory_space<vmem>>, %arg2: memref<8x16xf32, #tpu.memory_space<vmem>>, %arg3: memref<12x16xf32, #tpu.memory_space<vmem>>, %arg4: memref<12x16xf32, #tpu.memory_space<vmem>>) attributes {dimension_semantics = [#tpu.dimension_semantics<parallel>], iteration_bounds = array<i64: 2>, scalar_prefetch = 0 : i64, scratch_operands = 2 : i64, tpu.core_type = #tpu.core_type<tc>, window_params = [{transform_indices = @transform_0, window_bounds = array<i64: 1, 3, 16, 16>}, {transform_indices = @transform_1, window_bounds = array<i64: 8, 16>}]} {
    %c8_i32 = arith.constant 8 : i32
    %0 = arith.muli %arg0, %c8_i32 : i32
    %1 = tpu.assume_multiple %0, 8 : i32
    %c1_i32 = arith.constant 1 : i32
    %2 = arith.subi %1, %c1_i32 : i32
    %c0_i32 = arith.constant 0 : i32
    %c6_i32 = arith.constant 6 : i32
    %3 = arith.maxsi %c0_i32, %2 : i32
    %4 = arith.minsi %c6_i32, %3 : i32
    %c0 = arith.constant 0 : index
    %c0_0 = arith.constant 0 : index
    %5 = arith.index_cast %4 : i32 to index
    %c0_1 = arith.constant 0 : index
    %6 = vector.load %arg1[%c0, %c0_0, %5, %c0_1] : memref<1x3x16x16xf32, #tpu.memory_space<vmem>>, vector<1x1x10x16xf32>
    %7 = vector.shape_cast %6 : vector<1x1x10x16xf32> to vector<10x16xf32>
    %cst = arith.constant 2.990000e-01 : f32
    %8 = vector.broadcast %cst : f32 to vector<10x16xf32>
    %9 = arith.mulf %8, %7 : vector<10x16xf32>
    %c0_2 = arith.constant 0 : index
    %c1 = arith.constant 1 : index
    %10 = arith.index_cast %4 : i32 to index
    %c0_3 = arith.constant 0 : index
    %11 = vector.load %arg1[%c0_2, %c1, %10, %c0_3] : memref<1x3x16x16xf32, #tpu.memory_space<vmem>>, vector<1x1x10x16xf32>
    %12 = vector.shape_cast %11 : vector<1x1x10x16xf32> to vector<10x16xf32>
    %cst_4 = arith.constant 5.870000e-01 : f32
    %13 = vector.broadcast %cst_4 : f32 to vector<10x16xf32>
    %14 = arith.mulf %13, %12 : vector<10x16xf32>
    %15 = arith.addf %9, %14 : vector<10x16xf32>
    %c0_5 = arith.constant 0 : index
    %c2 = arith.constant 2 : index
    %16 = arith.index_cast %4 : i32 to index
    %c0_6 = arith.constant 0 : index
    %17 = vector.load %arg1[%c0_5, %c2, %16, %c0_6] : memref<1x3x16x16xf32, #tpu.memory_space<vmem>>, vector<1x1x10x16xf32>
    %18 = vector.shape_cast %17 : vector<1x1x10x16xf32> to vector<10x16xf32>
    %cst_7 = arith.constant 1.140000e-01 : f32
    %19 = vector.broadcast %cst_7 : f32 to vector<10x16xf32>
    %20 = arith.mulf %19, %18 : vector<10x16xf32>
    %21 = arith.addf %15, %20 : vector<10x16xf32>
    %cst_8 = arith.constant 0.000000e+00 : f32
    %22 = vector.broadcast %cst_8 : f32 to vector<10x1xf32>
    %23 = vector.extract_strided_slice %21 {offsets = [0, 0], sizes = [10, 15], strides = [1, 1]} : vector<10x16xf32> to vector<10x15xf32>
    %24 = tpu.concatenate %22, %23 in 1 : vector<10x1xf32>, vector<10x15xf32> -> vector<10x16xf32>
    %25 = vector.extract_strided_slice %21 {offsets = [0, 1], sizes = [10, 15], strides = [1, 1]} : vector<10x16xf32> to vector<10x15xf32>
    %26 = tpu.concatenate %25, %22 in 1 : vector<10x15xf32>, vector<10x1xf32> -> vector<10x16xf32>
    %27 = arith.subf %26, %24 : vector<10x16xf32>
    %cst_9 = arith.constant 2.000000e+00 : f32
    %28 = vector.broadcast %cst_9 : f32 to vector<10x16xf32>
    %29 = arith.mulf %28, %21 : vector<10x16xf32>
    %30 = arith.addf %24, %29 : vector<10x16xf32>
    %31 = arith.addf %30, %26 : vector<10x16xf32>
    %cst_10 = arith.constant 0.000000e+00 : f32
    %32 = vector.broadcast %cst_10 : f32 to vector<1x16xf32>
    %c0_11 = arith.constant 0 : index
    %c0_12 = arith.constant 0 : index
    %33 = vector.load %arg3[%c0_11, %c0_12] : memref<12x16xf32, #tpu.memory_space<vmem>>, vector<1x16xf32>
    tpu.vector_store %arg3[%c0_11, %c0_12], %32 {strides = array<i32>} : memref<12x16xf32, #tpu.memory_space<vmem>>, vector<1x16xf32>,
    %cst_13 = arith.constant 0.000000e+00 : f32
    %34 = vector.broadcast %cst_13 : f32 to vector<1x16xf32>
    %c0_14 = arith.constant 0 : index
    %c0_15 = arith.constant 0 : index
    %35 = vector.load %arg4[%c0_14, %c0_15] : memref<12x16xf32, #tpu.memory_space<vmem>>, vector<1x16xf32>
    tpu.vector_store %arg4[%c0_14, %c0_15], %34 {strides = array<i32>} : memref<12x16xf32, #tpu.memory_space<vmem>>, vector<1x16xf32>,
    %cst_16 = arith.constant 0.000000e+00 : f32
    %36 = vector.broadcast %cst_16 : f32 to vector<1x16xf32>
    %c11 = arith.constant 11 : index
    %c0_17 = arith.constant 0 : index
    %37 = vector.load %arg3[%c11, %c0_17] : memref<12x16xf32, #tpu.memory_space<vmem>>, vector<1x16xf32>
    tpu.vector_store %arg3[%c11, %c0_17], %36 {strides = array<i32>} : memref<12x16xf32, #tpu.memory_space<vmem>>, vector<1x16xf32>,
    %cst_18 = arith.constant 0.000000e+00 : f32
    %38 = vector.broadcast %cst_18 : f32 to vector<1x16xf32>
    %c11_19 = arith.constant 11 : index
    %c0_20 = arith.constant 0 : index
    %39 = vector.load %arg4[%c11_19, %c0_20] : memref<12x16xf32, #tpu.memory_space<vmem>>, vector<1x16xf32>
    tpu.vector_store %arg4[%c11_19, %c0_20], %38 {strides = array<i32>} : memref<12x16xf32, #tpu.memory_space<vmem>>, vector<1x16xf32>,
    %c1_21 = arith.constant 1 : index
    %c0_22 = arith.constant 0 : index
    %40 = vector.load %arg3[%c1_21, %c0_22] : memref<12x16xf32, #tpu.memory_space<vmem>>, vector<10x16xf32>
    tpu.vector_store %arg3[%c1_21, %c0_22], %27 {strides = array<i32>} : memref<12x16xf32, #tpu.memory_space<vmem>>, vector<10x16xf32>,
    %c1_23 = arith.constant 1 : index
    %c0_24 = arith.constant 0 : index
    %41 = vector.load %arg4[%c1_23, %c0_24] : memref<12x16xf32, #tpu.memory_space<vmem>>, vector<10x16xf32>
    tpu.vector_store %arg4[%c1_23, %c0_24], %31 {strides = array<i32>} : memref<12x16xf32, #tpu.memory_space<vmem>>, vector<10x16xf32>,
    %c1_i32_25 = arith.constant 1 : i32
    %42 = arith.subi %1, %c1_i32_25 : i32
    %43 = arith.subi %42, %4 : i32
    %c1_i32_26 = arith.constant 1 : i32
    %44 = arith.addi %43, %c1_i32_26 : i32
    %45 = arith.index_cast %44 : i32 to index
    %c0_27 = arith.constant 0 : index
    %46 = vector.load %arg3[%45, %c0_27] : memref<12x16xf32, #tpu.memory_space<vmem>>, vector<8x16xf32>
    %c2_i32 = arith.constant 2 : i32
    %47 = arith.addi %43, %c2_i32 : i32
    %48 = arith.index_cast %47 : i32 to index
    %c0_28 = arith.constant 0 : index
    %49 = vector.load %arg3[%48, %c0_28] : memref<12x16xf32, #tpu.memory_space<vmem>>, vector<8x16xf32>
    %cst_29 = arith.constant 2.000000e+00 : f32
    %50 = vector.broadcast %cst_29 : f32 to vector<8x16xf32>
    %51 = arith.mulf %50, %49 : vector<8x16xf32>
    %52 = arith.addf %46, %51 : vector<8x16xf32>
    %c3_i32 = arith.constant 3 : i32
    %53 = arith.addi %43, %c3_i32 : i32
    %54 = arith.index_cast %53 : i32 to index
    %c0_30 = arith.constant 0 : index
    %55 = vector.load %arg3[%54, %c0_30] : memref<12x16xf32, #tpu.memory_space<vmem>>, vector<8x16xf32>
    %56 = arith.addf %52, %55 : vector<8x16xf32>
    %c3_i32_31 = arith.constant 3 : i32
    %57 = arith.addi %43, %c3_i32_31 : i32
    %58 = arith.index_cast %57 : i32 to index
    %c0_32 = arith.constant 0 : index
    %59 = vector.load %arg4[%58, %c0_32] : memref<12x16xf32, #tpu.memory_space<vmem>>, vector<8x16xf32>
    %c1_i32_33 = arith.constant 1 : i32
    %60 = arith.addi %43, %c1_i32_33 : i32
    %61 = arith.index_cast %60 : i32 to index
    %c0_34 = arith.constant 0 : index
    %62 = vector.load %arg4[%61, %c0_34] : memref<12x16xf32, #tpu.memory_space<vmem>>, vector<8x16xf32>
    %63 = arith.subf %59, %62 : vector<8x16xf32>
    %64 = arith.mulf %56, %56 : vector<8x16xf32>
    %65 = arith.mulf %63, %63 : vector<8x16xf32>
    %66 = arith.addf %64, %65 : vector<8x16xf32>
    %67 = math.sqrt %66 : vector<8x16xf32>
    %cst_35 = arith.constant 4.000000e-01 : f32
    %68 = vector.broadcast %cst_35 : f32 to vector<8x16xf32>
    %69 = arith.subf %67, %68 : vector<8x16xf32>
    %cst_36 = arith.constant 5.000000e+00 : f32
    %70 = vector.broadcast %cst_36 : f32 to vector<8x16xf32>
    %71 = arith.mulf %70, %69 : vector<8x16xf32>
    %72 = arith.negf %71 : vector<8x16xf32>
    %73 = math.exp %72 : vector<8x16xf32>
    %cst_37 = arith.constant 1.000000e+00 : f32
    %74 = vector.broadcast %cst_37 : f32 to vector<8x16xf32>
    %75 = arith.addf %74, %73 : vector<8x16xf32>
    %76 = arith.divf %74, %75 : vector<8x16xf32>
    %c0_38 = arith.constant 0 : index
    %c0_39 = arith.constant 0 : index
    %77 = vector.load %arg2[%c0_38, %c0_39] : memref<8x16xf32, #tpu.memory_space<vmem>>, vector<8x16xf32>
    tpu.vector_store %arg2[%c0_38, %c0_39], %76 {strides = array<i32>} : memref<8x16xf32, #tpu.memory_space<vmem>>, vector<8x16xf32>,
    return
  }
  func.func @transform_0(%arg0: i32) -> (i32, i32, i32, i32) {
    %c0_i32 = arith.constant 0 : i32
    %c0_i32_0 = arith.constant 0 : i32
    %c0_i32_1 = arith.constant 0 : i32
    %c0_i32_2 = arith.constant 0 : i32
    %c0_i32_3 = arith.constant 0 : i32
    return %c0_i32, %c0_i32_0, %c0_i32_1, %c0_i32_2 : i32, i32, i32, i32
  }
  func.func @transform_1(%arg0: i32) -> (i32, i32) {
    %c0_i32 = arith.constant 0 : i32
    %c0_i32_0 = arith.constant 0 : i32
    return %arg0, %c0_i32 : i32, i32
  }
}

</mosaic_0001>

<llo_original>
// kernel: tpu_custom_call.1
$region0: #{tpu_custom_call.1}
  #allocation0 [shape = 'u32[]', space=smem, size = 0x4, offset = 0x4, fixed_abs, tag = 'smem constant byte address 0x4 - core index']
  #allocation1 [shape = 'u32[72,128]{1,0:T(1,128)}', space=vmem, size = 0x9000, scoped, tag = 'internal scratch']
  #allocation2 [shape = 'f32[12,16]{1,0:T(8,128)}', space=vmem, size = 0x2000, scoped, tag = 'scratch operand']
  #allocation3 [shape = 'f32[12,16]{1,0:T(8,128)}', space=vmem, size = 0x2000, scoped, tag = 'scratch operand']
  %s0 = inlined_call_operand.hbm [shape: f32[2,3,16,16], index: 0, kind: input, shape index: {}]
  %s1 = inlined_call_operand.hbm [shape: f32[16,16], index: 1, kind: output, shape index: {}]
  %s2 = sld [smem:[#allocation0]]
  $region41: #{tpu_custom_call.1} parent=0
    _
  %s4 = ssub.s32 1, %s2
  %s5 = scalar_select 0, %s4, %s2
  $region1: #{tpu_custom_call.1} parent=0
    #allocation4 [shape = 'u8[24576]{0}', space=vmem, size = 0x6000, scoped, tag = 'input window, operand 0, single buffered']
    #allocation5 [shape = 's32[2]{0}', space=sflag, size = 0x8, scoped, tag = 'scoped memory for tpu_custom_call.1']
    #allocation6 [shape = 's32[2]{0}', space=sflag, size = 0x8, scoped, tag = 'scoped memory for tpu_custom_call.1']
    #allocation7 [shape = 'u8[8192]{0}', space=vmem, size = 0x2000, scoped, tag = 'output window, operand 0']
    %6 = vsyncpa [#allocation5], 0
    %7 = vsyncpa [#allocation6], 0
    %s8 = scalar_lea.sflag [#allocation6], 1
    %9 = vsyncpa %s8, 0
    loop: start=0, step=1, limit=4
    $region2: #{tpu_custom_call.1} parent=1 // loop_pre_header
      _
    $region3: #{tpu_custom_call.1} parent=1 // loop_header
      %s11 = sphi 0, %s15
      %p12 = scmp.ge.s32.totalorder %s11, 4
      %s19 = sphi 0, %s19
      %s21 = sphi 0, %s19
      %s22 = sphi 0, %s21
      %s36 = sphi 0, %s22
      %s42 = sphi 0, %s44
      %s45 = sphi 0, %s42
      %s46 = sphi 0, %s45
      %s62 = sphi 0, %s46
    $region4: #{tpu_custom_call.1} parent=1 // loop_header_branch
      %14 = sbr.rel (%p12) target = $region8
    $region5: #{tpu_custom_call.1} parent=1 // loop_body
      %s16 = ssub.s32 %s11, 1
      %s17 = ssub.s32 %s11, 2
      %s18 = sadd.s32 %s11, 1
      %s20 = sadd.s32 %s19, 1
      %p23 = scmp.eq.s32.totalorder %s11, 1
      %p24 = scmp.ne.s32.totalorder %s19, %s21
      %p25 = scmp.eq.s32.totalorder %s11, 0
      %p26 = por %p24, %p25
      %p27 = scmp.ne.s32.totalorder %s19, %s21
      %p28 = scmp.eq.s32.totalorder %s16, 1
      %p29 = por %p27, %p28
      %p30 = scmp.ne.s32.totalorder %s21, %s22
      %p31 = scmp.eq.s32.totalorder %s16, 0
      %p32 = por %p30, %p31
      %p33 = scmp.ne.s32.totalorder %s21, %s22
      %p34 = scmp.eq.s32.totalorder %s17, 1
      %p35 = por %p33, %p34
      %p37 = scmp.ne.s32.totalorder %s22, %s36
      %p38 = scmp.eq.s32.totalorder %s17, 0
      %p39 = por %p37, %p38
      %s40 = ssub.s32 %s11, %s18
      %p41 = scmp.eq.s32.totalorder %s40, 0
      %s43 = sadd.s32 %s42, 1
      %s44 = scalar_select %p41, %s42, %s43
      %p47 = pneg %p41
      %p48 = scmp.eq.s32.totalorder %s11, 1
      %p49 = por %p47, %p48
      %p50 = scmp.ne.s32.totalorder %s42, %s45
      %p51 = scmp.eq.s32.totalorder %s11, 0
      %p52 = por %p50, %p51
      %p53 = scmp.ne.s32.totalorder %s42, %s45
      %p54 = scmp.eq.s32.totalorder %s16, 1
      %p55 = por %p53, %p54
      %p56 = scmp.ne.s32.totalorder %s45, %s46
      %p57 = scmp.eq.s32.totalorder %s16, 0
      %p58 = por %p56, %p57
      %p59 = scmp.ne.s32.totalorder %s45, %s46
      %p60 = scmp.eq.s32.totalorder %s17, 1
      %p61 = por %p59, %p60
      %p63 = scmp.ne.s32.totalorder %s46, %s62
      %p64 = scmp.eq.s32.totalorder %s17, 0
      %p65 = por %p63, %p64
      %p66 = scmp.le.s32.totalorder 1, %s11
      %p67 = scmp.lt.s32.totalorder %s11, 3
      %p68 = pnand %p66, %p67
      %p69 = pneg %p68
      // Predicated region
      $region9: #{tpu_custom_call.1} parent=5 // pred_check
        _
      $region10: #{tpu_custom_call.1} parent=5 // pred_check_branch
        %71 = sbr.rel (%p68) target = $region12
      $region11: #{tpu_custom_call.1} parent=5 // pred_region
        %s72 = ssub.s32 %s11, 1
        // Predicated region
        $region13: #{tpu_custom_call.1} parent=11 // pred_check
          %p73 = pneg %p32
        $region14: #{tpu_custom_call.1} parent=11 // pred_check_branch
          %75 = sbr.rel (%p73) target = $region16
        $region15: #{tpu_custom_call.1} parent=11 // pred_region
          %77 = vsyncadd [#allocation5], 0
          %s78 = sshll.u32 %s0, 4
          %s79 = int_to_ptr.hbm [resolvable:$true] %s78
          %s80 = sshll.u32 [#allocation4], 4
          %s81 = int_to_ptr.vmem [resolvable:$true] %s80
          %86 = dma.hbm_to_vmem [thread:$0]  %s79, 768, %s81, [#allocation5], 128, 128, 8
        $region16: #{tpu_custom_call.1} parent=11 // pred_fallthru
          _
      $region12: #{tpu_custom_call.1} parent=5 // pred_fallthru
        _
      %p87 = scmp.lt.s32.totalorder %s11, 2
      // Predicated region
      $region17: #{tpu_custom_call.1} parent=5 // pred_check
        %p88 = pneg %p87
      $region18: #{tpu_custom_call.1} parent=5 // pred_check_branch
        %90 = sbr.rel (%p88) target = $region20
      $region19: #{tpu_custom_call.1} parent=5 // pred_region
        _
      $region20: #{tpu_custom_call.1} parent=5 // pred_fallthru
        _
      %p91 = scmp.le.s32.totalorder 1, %s11
      %p92 = scmp.lt.s32.totalorder %s11, 3
      %p93 = pnand %p91, %p92
      %p94 = pneg %p93
      // Predicated region
      $region21: #{tpu_custom_call.1} parent=5 // pred_check
        _
      $region22: #{tpu_custom_call.1} parent=5 // pred_check_branch
        %96 = sbr.rel (%p93) target = $region24
      $region23: #{tpu_custom_call.1} parent=5 // pred_region
        %s97 = ssub.s32 %s11, 1
        // Predicated region
        $region25: #{tpu_custom_call.1} parent=23 // pred_check
          %p98 = pneg %p32
        $region26: #{tpu_custom_call.1} parent=23 // pred_check_branch
          %100 = sbr.rel (%p98) target = $region28
        $region27: #{tpu_custom_call.1} parent=23 // pred_region
          %102 = dma.done [#allocation5], 768
        $region28: #{tpu_custom_call.1} parent=23 // pred_fallthru
          _
        %p103 = pneg %p32
        %p104 = pneg %p29
        %p105 = pneg %p58
        %p106 = pneg %p55
        %s107 = sand.u32 %s45, 1
        %s108 = scalar_lea.sflag [#allocation6], %s107
        %s109 = sand.u32 %s45, 1
        %s110 = smul.addr %s109, 8
        %s111 = scalar_lea.vmem [#allocation7], %s110
        %s112 = smul.u32 %s16, 8
        %s113 = ssub.s32 %s112, 1
        %p114 = scmp.gt.s32.totalorder %s113, 0
        %s115 = scalar_select %p114, %s113, 0
        %p116 = scmp.lt.s32.totalorder %s115, 6
        %s117 = scalar_select %p116, %s115, 6
        %s118 = scalar_lea.vmem [#allocation4], %s117
        %v119 = vld [vmem:[%s118] sm:$0xff]
        %v120 = vld [vmem:[%s118 + $0x8] sm:$0x3]
        %v121 = vmul.f32 %v119, 0.299
        %v122 = vmul.f32 %v120, 0.299
        %s123 = sadd.s32 %s117, 16
        %s124 = scalar_lea.vmem [#allocation4], %s123
        %v125 = vld [vmem:[%s124] sm:$0xff]
        %v126 = vld [vmem:[%s124 + $0x8] sm:$0x3]
        %v127 = vmul.f32 %v125, 0.587
        %v128 = vmul.f32 %v126, 0.587
        %v129 = vadd.f32 %v121, %v127
        %v130 = vadd.f32 %v122, %v128
        %s131 = sadd.s32 %s117, 32
        %s132 = scalar_lea.vmem [#allocation4], %s131
        %v133 = vld [vmem:[%s132] sm:$0xff]
        %v134 = vld [vmem:[%s132 + $0x8] sm:$0x3]
        %v135 = vmul.f32 %v133, 0.114
        %v136 = vmul.f32 %v134, 0.114
        %v137 = vadd.f32 %v129, %v135
        %v138 = vadd.f32 %v130, %v136
        %141 = vrot.lane.b32.xlu0 %v137, 1
        %v142 = vpop.permute.xlu0 %141
        %143 = vrot.lane.b32.xlu0 %v138, 1
        %v144 = vpop.permute.xlu0 %143
        %vm147 = vcmask 7168
        %v148 = vsel %vm147, 0.0, %v142
        %v149 = vsel %vm147, 0.0, %v144
        %150 = vrot.lane.b32.xlu0 %v137, 127
        %v151 = vpop.permute.xlu0 %150
        %152 = vrot.lane.b32.xlu0 %v138, 127
        %v153 = vpop.permute.xlu0 %152
        %vm156 = vcmask 121856
        %v157 = vsel %vm156, %v151, 0.0
        %v158 = vsel %vm156, %v153, 0.0
        %v159 = vsub.f32 %v157, %v148
        %v160 = vsub.f32 %v158, %v149
        %v161 = vmul.f32 %v137, 2.0
        %v162 = vmul.f32 %v138, 2.0
        %v163 = vadd.f32 %v148, %v161
        %v164 = vadd.f32 %v149, %v162
        %v165 = vadd.f32 %v163, %v157
        %v166 = vadd.f32 %v164, %v158
        %vm167 = vcmask 122880
        %168 = vst.msk [vmem:[#allocation2] sm:$0x1] %vm167, 0.0
        %169 = vst.msk [vmem:[#allocation3] sm:$0x1] %vm167, 0.0
        %170 = vst.msk [vmem:[#allocation2 + $0xb] sm:$0x1] %vm167, 0.0
        %171 = vst.msk [vmem:[#allocation3 + $0xb] sm:$0x1] %vm167, 0.0
        %vm172 = vcmask 130048
        %173 = vst.msk [vmem:[#allocation2 + $0x1] sm:$0xff] %vm172, %v159
        %vm174 = vcmask 123904
        %175 = vst.msk [vmem:[#allocation2 + $0x9] sm:$0x3] %vm174, %v160
        %176 = vst.msk [vmem:[#allocation3 + $0x1] sm:$0xff] %vm172, %v165
        %177 = vst.msk [vmem:[#allocation3 + $0x9] sm:$0x3] %vm174, %v166
        %s178 = ssub.s32 %s113, %s117
        %s179 = sadd.s32 %s178, 1
        %s180 = scalar_lea.vmem [#allocation2], %s179
        %v181 = vld [vmem:[%s180] sm:$0xff]
        %s182 = sadd.s32 %s178, 2
        %s183 = scalar_lea.vmem [#allocation2], %s182
        %v184 = vld [vmem:[%s183] sm:$0xff]
        %v185 = vmul.f32 %v184, 2.0
        %v186 = vadd.f32 %v181, %v185
        %s187 = sadd.s32 %s178, 3
        %s188 = scalar_lea.vmem [#allocation2], %s187
        %v189 = vld [vmem:[%s188] sm:$0xff]
        %v190 = vadd.f32 %v186, %v189
        %s191 = scalar_lea.vmem [#allocation3], %s187
        %v192 = vld [vmem:[%s191] sm:$0xff]
        %s193 = scalar_lea.vmem [#allocation3], %s179
        %v194 = vld [vmem:[%s193] sm:$0xff]
        %v195 = vsub.f32 %v192, %v194
        %v196 = vmul.f32 %v190, %v190
        %v197 = vmul.f32 %v195, %v195
        %v198 = vadd.f32 %v196, %v197
        %v199 = vrsqrt.pop %v198
        %v200 = vmul.f32 %v199, %v198
        %v201 = vmul.f32 %v200, %v199
        %v202 = vmul.f32 0.5, %v201
        %v203 = vsub.f32 1.5, %v202
        %v204 = vmul.f32 %v199, %v203
        %v205 = vmul.f32 %v198, %v204
        %vm206 = vcmp.eq.f32.partialorder %v198, inf
        %v207 = vsel %vm206, %v198, %v205
        %vm208 = vcmp.eq.f32.partialorder %v198, 0.0
        %v209 = vand.u32 %v198, 2147483648
        %v210 = vsel %vm208, %v209, %v207
        %v211 = vsub.f32 %v210, 0.4
        %v212 = vmul.f32 %v211, 5.0
        %v213 = vxor.u32 %v212, 2147483648
        %v214 = vmul.f32 %v213, 1.442695
        %v215 = vpow.pop %v214
        %v216 = vadd.f32 %v215, 1.0
        %v217 = vrcp.pop %v216
        %v218 = vmul.f32 %v216, %v217
        %v219 = vsub.f32 1.0, %v218
        %v220 = vmul.f32 %v217, %v219
        %v221 = vadd.f32 %v217, %v220
        %vm222 = vweird.f32 %v216
        %vm223 = vweird.f32 %v217
        %vm224 = vmor %vm222, %vm223
        %v225 = vsel %vm224, %v217, %v221
        %v226 = vand.u32 2147483647, %v216
        %vm227 = vcmp.eq.f32.partialorder %v226, 8.507059e+37
        %v228 = vand.u32 %v216, 2147483648
        %v229 = vor.u32 1.1754944e-38, %v228
        %v230 = vsel %vm227, %v229, %v225
        %v231 = vmul.f32 1.0, %v230
        %232 = vst.msk [vmem:[%s111] sm:$0xff] %vm172, %v231
        %s233 = sand.u32 %s45, 1
        %s234 = scalar_lea.sflag [#allocation6], %s233
        %s235 = sand.u32 %s45, 1
        %s236 = smul.addr %s235, 8
        %s237 = scalar_lea.vmem [#allocation7], %s236
        // Predicated region
        $region29: #{tpu_custom_call.1} parent=23 // pred_check
          %p238 = pneg %p55
        $region30: #{tpu_custom_call.1} parent=23 // pred_check_branch
          %240 = sbr.rel (%p238) target = $region32
        $region31: #{tpu_custom_call.1} parent=23 // pred_region
          %242 = vsyncadd %s234, 0
          %s243 = smul.addr %s16, 8
          %s244 = scalar_lea.hbm %s1, %s243
          %s246 = sshll.u32 %s237, 4
          %s247 = int_to_ptr.vmem [resolvable:$true] %s246
          %s248 = sshll.u32 %s244, 4
          %s249 = int_to_ptr.hbm [resolvable:$true] %s248
          %251 = dma.vmem_to_hbm [thread:$0]  %s247, 128, %s249, %s234
        $region32: #{tpu_custom_call.1} parent=23 // pred_fallthru
          _
      $region24: #{tpu_custom_call.1} parent=5 // pred_fallthru
        _
      %p252 = scmp.le.s32.totalorder 2, %s11
      // Predicated region
      $region33: #{tpu_custom_call.1} parent=5 // pred_check
        %p253 = pneg %p252
      $region34: #{tpu_custom_call.1} parent=5 // pred_check_branch
        %255 = sbr.rel (%p253) target = $region36
      $region35: #{tpu_custom_call.1} parent=5 // pred_region
        %s256 = ssub.s32 %s11, 2
        // Predicated region
        $region37: #{tpu_custom_call.1} parent=35 // pred_check
          %p257 = pneg %p61
        $region38: #{tpu_custom_call.1} parent=35 // pred_check_branch
          %259 = sbr.rel (%p257) target = $region40
        $region39: #{tpu_custom_call.1} parent=35 // pred_region
          %s260 = sand.u32 %s46, 1
          %s261 = scalar_lea.sflag [#allocation6], %s260
          %s262 = sand.u32 %s46, 1
          %s263 = smul.addr %s262, 8
          %s264 = scalar_lea.vmem [#allocation7], %s263
          %266 = dma.done %s261, 128
        $region40: #{tpu_custom_call.1} parent=35 // pred_fallthru
          _
      $region36: #{tpu_custom_call.1} parent=5 // pred_fallthru
        _
    $region6: #{tpu_custom_call.1} parent=1 // loop_footer
      %s15 = sadd.s32 1, %s11
    $region7: #{tpu_custom_call.1} parent=1 // loop_footer_branch
      %10 = sbr.rel target = $region3
    $region8: #{tpu_custom_call.1} parent=1 // loop_exit
      _
    %267 = vsyncpa [#allocation5], 1
    %s268 = scalar_lea.sflag [#allocation5], 1
    %269 = vsyncpa %s268, 1
    %270 = vsyncpa [#allocation6], 1
    %s271 = scalar_lea.sflag [#allocation6], 1
    %272 = vsyncpa %s271, 1

</llo_original>
